<compile_context>
chip_gen: v7x
topology: tpu7x:2x2x1
jax: 0.10.0
libtpu: 0.0.40
codegen_flags: <defaults>
</compile_context>

<pallas_src>
import math
from functools import partial

import jax
import jax.numpy as jnp
from jax.experimental import pallas as pl
from jax.experimental.pallas import tpu as pltpu


# ----------------------------------------------------------------------------
# psf2otf (FFT-based, one-time precompute) — plain JAX.
# The imaginary-part-zeroing branch of the torch psf2otf only strips eps-level
# imaginary noise; Denormin2 uses |otf|^2, so it is omitted (same values).
# ----------------------------------------------------------------------------
def psf2otf_jax(psf, shape):
    kh, kw = int(psf.shape[2]), int(psf.shape[3])
    otf = jnp.zeros(psf.shape[:2] + tuple(shape), dtype=psf.dtype)
    otf = otf.at[..., :kh, :kw].set(psf)
    otf = jnp.roll(otf, -int(math.floor(kh / 2)), axis=2)
    otf = jnp.roll(otf, -int(math.floor(kw / 2)), axis=3)
    return jnp.fft.fft2(otf)


def _channel_sum_sq(h, v, channels):
    # (h0^2 + v0^2) + (h1^2 + v1^2) + ... — sequential channel order matched to
    # the reference; no full (1, C, TH, M) g2 temporary is materialized.
    g = h[:, 0:1] * h[:, 0:1] + v[:, 0:1] * v[:, 0:1]
    for c in range(1, channels):
        g = g + (h[:, c:c + 1] * h[:, c:c + 1] + v[:, c:c + 1] * v[:, c:c + 1])
    return g


# ----------------------------------------------------------------------------
# Tiled kernel (N % 8 == 0, N % TH == 0, TH % 8 == 0).
#   thr_ref : SMEM f32[1]    lambda / beta
#   s_ref   : (1, C, TH, M)  S rows [r0, r0+TH)
#   top_ref : (1, C, 8,  M)  8-row slab whose LAST  row is row (r0-1)  mod N
#   bot_ref : (1, C, 8,  M)  8-row slab whose FIRST row is row (r0+TH) mod N
#   out_ref : (1, C, TH, M)  Normin2 rows [r0, r0+TH)
# ----------------------------------------------------------------------------
def _normin2_tiled_kernel(thr_ref, s_ref, top_ref, bot_ref, out_ref, *, channels):
    thr = thr_ref[0]
    s = s_ref[...]
    TH, M = s.shape[2], s.shape[3]
    s_prev = top_ref[...][:, :, 7:8, :]      # row r0-1 (circular), (1, C, 1, M)
    s_next = bot_ref[...][:, :, 0:1, :]      # row r0+TH (circular), (1, C, 1, M)

    row = jax.lax.broadcasted_iota(jnp.int32, (1, 1, TH, M), 2)
    first_row = row == 0
    last_row = row == TH - 1

    # Circular forward differences:  h[j] = S[j+1]-S[j],  v[i] = S[i+1]-S[i].
    # The lane axis (W) carries the full image width, so a lane roll is exactly
    # circular; the sublane axis (H) is a tile, so the wrap row comes from the
    # halo instead of a roll (a tile-local roll would wrap at the tile edge).
    h = pltpu.roll(s, shift=M - 1, axis=3) - s
    h_prev = pltpu.roll(s_prev, shift=M - 1, axis=3) - s_prev
    s_down = jnp.where(last_row, s_next, pltpu.roll(s, shift=TH - 1, axis=2))
    v = s_down - s                            # rows r0 .. r0+TH-1
    v_prev = s[:, :, 0:1, :] - s_prev         # row r0-1

    # Channel-summed L0 threshold; (1,1,TH,M) mask broadcasts over C in where.
    mask = _channel_sum_sq(h, v, channels) < thr
    h = jnp.where(mask, 0.0, h)
    v = jnp.where(mask, 0.0, v)
    mask_prev = _channel_sum_sq(h_prev, v_prev, channels) < thr
    v_prev = jnp.where(mask_prev, 0.0, v_prev)

    # Circular divergence: n2[i,j] = (h[i,j-1]-h[i,j]) + (v[i-1,j]-v[i,j]).
    v_up = jnp.where(first_row, v_prev, pltpu.roll(v, shift=1, axis=2))
    out_ref[...] = (pltpu.roll(h, shift=1, axis=3) - h) + (v_up - v)


# ----------------------------------------------------------------------------
# Fallback kernel (N % 8 != 0): whole-image block; sublane rolls wrap at the
# full image height so they are exactly circular.
# TODO(synk): only used for odd toy heights; production images take the tiled path.
# ----------------------------------------------------------------------------
def _normin2_full_kernel(thr_ref, s_ref, out_ref, *, channels):
    thr = thr_ref[0]
    s = s_ref[...]
    N, M = s.shape[2], s.shape[3]
    h = pltpu.roll(s, shift=M - 1, axis=3) - s
    v = pltpu.roll(s, shift=N - 1, axis=2) - s
    mask = _channel_sum_sq(h, v, channels) < thr
    h = jnp.where(mask, 0.0, h)
    v = jnp.where(mask, 0.0, v)
    out_ref[...] = (pltpu.roll(h, shift=1, axis=3) - h) + \
                   (pltpu.roll(v, shift=1, axis=2) - v)


# ----------------------------------------------------------------------------
# VMEM-aware tile sizing.
# ----------------------------------------------------------------------------
def _vmem_capacity_bytes():
    try:
        return int(pltpu.get_tpu_info().vmem_capacity_bytes)
    except Exception:
        return 64 * 1024 * 1024          # conservative: v7x per-TensorCore VMEM


def _choose_tile_h(N, C, M):
    """Largest TH (N % TH == 0, TH % 8 == 0) whose (1,C,TH,M) f32 block stays
    within ~1/16 of VMEM: live set ≈ 2x in + 2x out double buffers + in-kernel
    temporaries ≈ 8-10 main blocks.  -> TH~128-256 on v7x (64 MiB), 256-512 on
    v5e/v6e (128 MiB) for C=3, M=1920."""
    budget = _vmem_capacity_bytes() // 16
    cands = [d for d in range(8, N + 1, 8) if N % d == 0]
    if not cands:
        return N
    fits = [d for d in cands if C * d * M * 4 <= budget]
    return max(fits) if fits else min(cands)


def _build_normin2_call(B, C, N, M, tile_h):
    smem_spec = pl.BlockSpec(memory_space=pltpu.MemorySpace.SMEM)
    capacity = _vmem_capacity_bytes()

    if N % 8 == 0:
        if tile_h is not None and tile_h % 8 == 0 and N % tile_h == 0:
            TH = tile_h
        else:
            TH = _choose_tile_h(N, C, M)
        nb, thb = N // 8, TH // 8
        main_bytes = C * TH * M * 4
        halo_bytes = C * 8 * M * 4
        vmem_limit = int(min(max(10 * main_bytes + 8 * halo_bytes, 32 << 20),
                             (capacity * 3) // 4))

        blk = pl.BlockSpec((1, C, TH, M), lambda b, i: (b, 0, i, 0))
        top = pl.BlockSpec((1, C, 8, M),
                           lambda b, i: (b, 0, (i * thb + (nb - 1)) % nb, 0))
        bot = pl.BlockSpec((1, C, 8, M),
                           lambda b, i: (b, 0, ((i + 1) * thb) % nb, 0))

        call = pl.pallas_call(
            partial(_normin2_tiled_kernel, channels=C),
            out_shape=jax.ShapeDtypeStruct((B, C, N, M), jnp.float32),
            grid=(B, N // TH),
            in_specs=[smem_spec, blk, top, bot],
            out_specs=blk,
            compiler_params=pltpu.CompilerParams(
                dimension_semantics=("parallel", "parallel"),
                vmem_limit_bytes=vmem_limit),
        )
        return lambda thr, S: call(thr, S, S, S)

    # N not a multiple of 8: whole-image block (block == full dims is allowed).
    vmem_limit = int(min(max(8 * C * N * M * 4, 32 << 20), (capacity * 3) // 4))
    blk = pl.BlockSpec((1, C, N, M), lambda b: (b, 0, 0, 0))
    call = pl.pallas_call(
        partial(_normin2_full_kernel, channels=C),
        out_shape=jax.ShapeDtypeStruct((B, C, N, M), jnp.float32),
        grid=(B,),
        in_specs=[smem_spec, blk],
        out_specs=blk,
        compiler_params=pltpu.CompilerParams(
            dimension_semantics=("parallel",),
            vmem_limit_bytes=vmem_limit),
    )
    return lambda thr, S: call(thr, S)


# ----------------------------------------------------------------------------
# Whole forward pass: ONE executable, ONE kernel instance inside a lax.scan
# over the (static-length) beta schedule.
# ----------------------------------------------------------------------------
@partial(jax.jit, static_argnums=(1, 2, 3))
def _l0_forward(image, lam, betas, tile_h):
    B, C, N, M = image.shape
    fx = jnp.array([[[[1.0, -1.0]]]], dtype=jnp.float32)
    fy = jnp.array([[[[1.0], [-1.0]]]], dtype=jnp.float32)

    otfFx = psf2otf_jax(fx, (N, M))
    otfFy = psf2otf_jax(fy, (N, M))
    den2 = (jnp.abs(otfFx) ** 2 + jnp.abs(otfFy) ** 2).astype(jnp.float32)  # (1,1,N,M)

    S0 = image.astype(jnp.float32)
    normin1 = jnp.fft.fft2(S0)                         # complex64

    normin2 = _build_normin2_call(B, C, N, M, tile_h)

    # Host-computed (double precision) schedule; thr matches the reference's
    # float(lambda/beta) bit-for-bit after the f32 cast.
    betas_arr = jnp.asarray(betas, dtype=jnp.float32)
    thrs_arr = jnp.asarray([lam / b for b in betas], dtype=jnp.float32)

    def step(S, bt):
        beta, thr = bt
        n2 = normin2(jnp.reshape(thr, (1,)), S)
        # Frequency-domain solve fused by XLA with the FFT output (no extra
        # real/imag materialization or pallas_call fusion barrier).
        f2 = jnp.fft.fft2(n2)
        inv_den = 1.0 / (1.0 + beta * den2)            # (1,1,N,M) f32
        Fs = (normin1 + beta * f2) * inv_den
        return jnp.real(jnp.fft.ifft2(Fs)).astype(jnp.float32), None

    S, _ = jax.lax.scan(step, S0, (betas_arr, thrs_arr))
    return S


def l0_smoothing_pallas(image, lambda_, in_channels, kappa=2.0, betamax=1e5,
                        tile_h=None):
    assert image.shape[1] == in_channels
    betas = []
    beta = 2.0 * float(lambda_)
    while beta < betamax:
        betas.append(beta)
        beta *= kappa
    return _l0_forward(image, float(lambda_), tuple(betas), tile_h)


# ----------------------------------------------------------------------------
# Pure-JAX reference (mirrors the torch module, op-order matched to the kernel
# for the threshold and the solve) — correctness check.
# ----------------------------------------------------------------------------
def l0_smoothing_ref(image, lambda_, in_channels, kappa=2.0, betamax=1e5):
    B, C, N, M = image.shape
    fx = jnp.array([[[[1.0, -1.0]]]], dtype=jnp.float32)
    fy = jnp.array([[[[1.0], [-1.0]]]], dtype=jnp.float32)
    otfFx = psf2otf_jax(fx, (N, M))
    otfFy = psf2otf_jax(fy, (N, M))
    den2 = (jnp.abs(otfFx) ** 2 + jnp.abs(otfFy) ** 2).astype(jnp.float32)  # (1,1,N,M)

    S = image.astype(jnp.float32)
    normin1 = jnp.fft.fft2(S)
    beta = 2.0 * float(lambda_)
    while beta < betamax:
        h = jnp.concatenate(
            [S[:, :, :, 1:] - S[:, :, :, :M - 1],
             (S[:, :, :, 0] - S[:, :, :, -1])[..., None]], axis=3)
        v = jnp.concatenate(
            [S[:, :, 1:, :] - S[:, :, :N - 1, :],
             (S[:, :, 0, :] - S[:, :, -1, :])[:, :, None, :]], axis=2)
        thr = float(lambda_ / beta)
        gsum = h[:, 0:1] * h[:, 0:1] + v[:, 0:1] * v[:, 0:1]
        for c in range(1, in_channels):
            gsum = gsum + (h[:, c:c + 1] * h[:, c:c + 1] + v[:, c:c + 1] * v[:, c:c + 1])
        mask = gsum < thr
        h = jnp.where(mask, 0.0, h)
        v = jnp.where(mask, 0.0, v)
        n2 = jnp.concatenate(
            [(h[:, :, :, -1] - h[:, :, :, 0])[..., None],
             h[:, :, :, :M - 1] - h[:, :, :, 1:]], axis=3)
        n2 = n2 + jnp.concatenate(
            [(v[:, :, -1, :] - v[:, :, 0, :])[:, :, None, :],
             v[:, :, :N - 1, :] - v[:, :, 1:, :]], axis=2)
        f2 = jnp.fft.fft2(n2)
        inv_den = 1.0 / (1.0 + beta * den2)
        Fs = (normin1 + beta * f2) * inv_den
        S = jnp.real(jnp.fft.ifft2(Fs)).astype(jnp.float32)
        beta *= kappa
    return S


if __name__ == "__main__":
    key = jax.random.PRNGKey(0)
    B, C, N, M = 2, 4, 16, 16
    x = jax.random.uniform(key, (B, C, N, M), dtype=jnp.float32)
    lambda_ = 0.02

    ref = jax.block_until_ready(l0_smoothing_ref(x, lambda_, in_channels=C))

    # Exercise both the multi-tile halo path (TH=8 -> grid (B, 2)) and the
    # auto-chosen single-tile (TH=N) path.
    for th in (8, None):
        out = jax.block_until_ready(
            l0_smoothing_pallas(x, lambda_, in_channels=C, tile_h=th))
        assert out.shape == (B, C, N, M) and out.dtype == jnp.float32
        max_err = float(jnp.max(jnp.abs(out - ref)))
        mean_err = float(jnp.mean(jnp.abs(out - ref)))
        # The hard L0 threshold can flip on last-ulp rounding differences and
        # get amplified through ~22 solve iterations; math is op-order matched
        # so this is normally ~0, but allow modest headroom for a rare flip.
        assert max_err < 1e-2 and mean_err < 1e-3, (th, max_err, mean_err)

    print("KERNEL_OK")
</pallas_src>

<mosaic_0001>
module attributes {stable_mosaic.version = 11 : i64} {
  func.func @_normin2_tiled_kernel(%arg0: i32, %arg1: i32, %arg2: memref<1xf32, #tpu.memory_space<smem>>, %arg3: memref<1x4x8x16xf32, #tpu.memory_space<vmem>>, %arg4: memref<1x4x8x16xf32, #tpu.memory_space<vmem>>, %arg5: memref<1x4x8x16xf32, #tpu.memory_space<vmem>>, %arg6: memref<1x4x8x16xf32, #tpu.memory_space<vmem>>) attributes {dimension_semantics = [#tpu.dimension_semantics<parallel>, #tpu.dimension_semantics<parallel>], iteration_bounds = array<i64: 2, 2>, scalar_prefetch = 0 : i64, scratch_operands = 0 : i64, tpu.core_type = #tpu.core_type<tc>, window_params = [{transform_indices = @transform_0, window_bounds = array<i64: 1>}, {transform_indices = @transform_1, window_bounds = array<i64: 1, 4, 8, 16>}, {transform_indices = @transform_2, window_bounds = array<i64: 1, 4, 8, 16>}, {transform_indices = @transform_3, window_bounds = array<i64: 1, 4, 8, 16>}, {transform_indices = @transform_4, window_bounds = array<i64: 1, 4, 8, 16>}]} {
    %c0 = arith.constant 0 : index
    %0 = memref.load %arg2[%c0] : memref<1xf32, #tpu.memory_space<smem>>
    %c0_0 = arith.constant 0 : index
    %c0_1 = arith.constant 0 : index
    %c0_2 = arith.constant 0 : index
    %c0_3 = arith.constant 0 : index
    %1 = vector.load %arg3[%c0_0, %c0_1, %c0_2, %c0_3] : memref<1x4x8x16xf32, #tpu.memory_space<vmem>>, vector<1x4x8x16xf32>
    %c0_4 = arith.constant 0 : index
    %c0_5 = arith.constant 0 : index
    %c0_6 = arith.constant 0 : index
    %c0_7 = arith.constant 0 : index
    %2 = vector.load %arg4[%c0_4, %c0_5, %c0_6, %c0_7] : memref<1x4x8x16xf32, #tpu.memory_space<vmem>>, vector<1x4x8x16xf32>
    %3 = vector.extract_strided_slice %2 {offsets = [0, 0, 7, 0], sizes = [1, 4, 1, 16], strides = [1, 1, 1, 1]} : vector<1x4x8x16xf32> to vector<1x4x1x16xf32>
    %c0_8 = arith.constant 0 : index
    %c0_9 = arith.constant 0 : index
    %c0_10 = arith.constant 0 : index
    %c0_11 = arith.constant 0 : index
    %4 = vector.load %arg5[%c0_8, %c0_9, %c0_10, %c0_11] : memref<1x4x8x16xf32, #tpu.memory_space<vmem>>, vector<1x4x8x16xf32>
    %5 = vector.extract_strided_slice %4 {offsets = [0, 0, 0, 0], sizes = [1, 4, 1, 16], strides = [1, 1, 1, 1]} : vector<1x4x8x16xf32> to vector<1x4x1x16xf32>
    %6 = tpu.iota {dimensions = array<i32: 2>} : vector<1x1x8x16xi32>
    %c0_i32 = arith.constant 0 : i32
    %7 = vector.broadcast %c0_i32 : i32 to vector<1x1x8x16xi32>
    %8 = arith.cmpi eq, %6, %7 : vector<1x1x8x16xi32>
    %c7_i32 = arith.constant 7 : i32
    %9 = vector.broadcast %c7_i32 : i32 to vector<1x1x8x16xi32>
    %10 = arith.cmpi eq, %6, %9 : vector<1x1x8x16xi32>
    %c15_i32 = arith.constant 15 : i32
    %11 = tpu.dynamic_rotate %1 by %c15_i32 dim 3 : vector<1x4x8x16xf32>, i32 -> vector<1x4x8x16xf32>
    %12 = arith.subf %11, %1 : vector<1x4x8x16xf32>
    %c15_i32_12 = arith.constant 15 : i32
    %13 = tpu.dynamic_rotate %3 by %c15_i32_12 dim 3 : vector<1x4x1x16xf32>, i32 -> vector<1x4x1x16xf32>
    %14 = arith.subf %13, %3 : vector<1x4x1x16xf32>
    %c7_i32_13 = arith.constant 7 : i32
    %15 = tpu.dynamic_rotate %1 by %c7_i32_13 dim 2 : vector<1x4x8x16xf32>, i32 -> vector<1x4x8x16xf32>
    %16 = vector.shape_cast %10 : vector<1x1x8x16xi1> to vector<1x1x8x16xi1>
    %17 = vector.broadcast %16 : vector<1x1x8x16xi1> to vector<1x4x8x16xi1>
    %18 = vector.shape_cast %5 : vector<1x4x1x16xf32> to vector<1x4x1x16xf32>
    %19 = vector.broadcast %18 : vector<1x4x1x16xf32> to vector<1x4x8x16xf32>
    %20 = arith.select %17, %19, %15 : vector<1x4x8x16xi1>, vector<1x4x8x16xf32>
    %21 = arith.subf %20, %1 : vector<1x4x8x16xf32>
    %22 = vector.extract_strided_slice %1 {offsets = [0, 0, 0, 0], sizes = [1, 4, 1, 16], strides = [1, 1, 1, 1]} : vector<1x4x8x16xf32> to vector<1x4x1x16xf32>
    %23 = arith.subf %22, %3 : vector<1x4x1x16xf32>
    %24 = vector.extract_strided_slice %12 {offsets = [0, 0, 0, 0], sizes = [1, 1, 8, 16], strides = [1, 1, 1, 1]} : vector<1x4x8x16xf32> to vector<1x1x8x16xf32>
    %25 = vector.extract_strided_slice %12 {offsets = [0, 0, 0, 0], sizes = [1, 1, 8, 16], strides = [1, 1, 1, 1]} : vector<1x4x8x16xf32> to vector<1x1x8x16xf32>
    %26 = arith.mulf %24, %25 : vector<1x1x8x16xf32>
    %27 = vector.extract_strided_slice %21 {offsets = [0, 0, 0, 0], sizes = [1, 1, 8, 16], strides = [1, 1, 1, 1]} : vector<1x4x8x16xf32> to vector<1x1x8x16xf32>
    %28 = vector.extract_strided_slice %21 {offsets = [0, 0, 0, 0], sizes = [1, 1, 8, 16], strides = [1, 1, 1, 1]} : vector<1x4x8x16xf32> to vector<1x1x8x16xf32>
    %29 = arith.mulf %27, %28 : vector<1x1x8x16xf32>
    %30 = arith.addf %26, %29 : vector<1x1x8x16xf32>
    %31 = vector.extract_strided_slice %12 {offsets = [0, 1, 0, 0], sizes = [1, 1, 8, 16], strides = [1, 1, 1, 1]} : vector<1x4x8x16xf32> to vector<1x1x8x16xf32>
    %32 = vector.extract_strided_slice %12 {offsets = [0, 1, 0, 0], sizes = [1, 1, 8, 16], strides = [1, 1, 1, 1]} : vector<1x4x8x16xf32> to vector<1x1x8x16xf32>
    %33 = arith.mulf %31, %32 : vector<1x1x8x16xf32>
    %34 = vector.extract_strided_slice %21 {offsets = [0, 1, 0, 0], sizes = [1, 1, 8, 16], strides = [1, 1, 1, 1]} : vector<1x4x8x16xf32> to vector<1x1x8x16xf32>
    %35 = vector.extract_strided_slice %21 {offsets = [0, 1, 0, 0], sizes = [1, 1, 8, 16], strides = [1, 1, 1, 1]} : vector<1x4x8x16xf32> to vector<1x1x8x16xf32>
    %36 = arith.mulf %34, %35 : vector<1x1x8x16xf32>
    %37 = arith.addf %33, %36 : vector<1x1x8x16xf32>
    %38 = arith.addf %30, %37 : vector<1x1x8x16xf32>
    %39 = vector.extract_strided_slice %12 {offsets = [0, 2, 0, 0], sizes = [1, 1, 8, 16], strides = [1, 1, 1, 1]} : vector<1x4x8x16xf32> to vector<1x1x8x16xf32>
    %40 = vector.extract_strided_slice %12 {offsets = [0, 2, 0, 0], sizes = [1, 1, 8, 16], strides = [1, 1, 1, 1]} : vector<1x4x8x16xf32> to vector<1x1x8x16xf32>
    %41 = arith.mulf %39, %40 : vector<1x1x8x16xf32>
    %42 = vector.extract_strided_slice %21 {offsets = [0, 2, 0, 0], sizes = [1, 1, 8, 16], strides = [1, 1, 1, 1]} : vector<1x4x8x16xf32> to vector<1x1x8x16xf32>
    %43 = vector.extract_strided_slice %21 {offsets = [0, 2, 0, 0], sizes = [1, 1, 8, 16], strides = [1, 1, 1, 1]} : vector<1x4x8x16xf32> to vector<1x1x8x16xf32>
    %44 = arith.mulf %42, %43 : vector<1x1x8x16xf32>
    %45 = arith.addf %41, %44 : vector<1x1x8x16xf32>
    %46 = arith.addf %38, %45 : vector<1x1x8x16xf32>
    %47 = vector.extract_strided_slice %12 {offsets = [0, 3, 0, 0], sizes = [1, 1, 8, 16], strides = [1, 1, 1, 1]} : vector<1x4x8x16xf32> to vector<1x1x8x16xf32>
    %48 = vector.extract_strided_slice %12 {offsets = [0, 3, 0, 0], sizes = [1, 1, 8, 16], strides = [1, 1, 1, 1]} : vector<1x4x8x16xf32> to vector<1x1x8x16xf32>
    %49 = arith.mulf %47, %48 : vector<1x1x8x16xf32>
    %50 = vector.extract_strided_slice %21 {offsets = [0, 3, 0, 0], sizes = [1, 1, 8, 16], strides = [1, 1, 1, 1]} : vector<1x4x8x16xf32> to vector<1x1x8x16xf32>
    %51 = vector.extract_strided_slice %21 {offsets = [0, 3, 0, 0], sizes = [1, 1, 8, 16], strides = [1, 1, 1, 1]} : vector<1x4x8x16xf32> to vector<1x1x8x16xf32>
    %52 = arith.mulf %50, %51 : vector<1x1x8x16xf32>
    %53 = arith.addf %49, %52 : vector<1x1x8x16xf32>
    %54 = arith.addf %46, %53 : vector<1x1x8x16xf32>
    %55 = vector.broadcast %0 : f32 to vector<1x1x8x16xf32>
    %56 = arith.cmpf olt, %54, %55 : vector<1x1x8x16xf32>
    %cst = arith.constant 0.000000e+00 : f32
    %57 = vector.shape_cast %56 : vector<1x1x8x16xi1> to vector<1x1x8x16xi1>
    %58 = vector.broadcast %57 : vector<1x1x8x16xi1> to vector<1x4x8x16xi1>
    %59 = vector.broadcast %cst : f32 to vector<1x4x8x16xf32>
    %60 = arith.select %58, %59, %12 : vector<1x4x8x16xi1>, vector<1x4x8x16xf32>
    %cst_14 = arith.constant 0.000000e+00 : f32
    %61 = vector.shape_cast %56 : vector<1x1x8x16xi1> to vector<1x1x8x16xi1>
    %62 = vector.broadcast %61 : vector<1x1x8x16xi1> to vector<1x4x8x16xi1>
    %63 = vector.broadcast %cst_14 : f32 to vector<1x4x8x16xf32>
    %64 = arith.select %62, %63, %21 : vector<1x4x8x16xi1>, vector<1x4x8x16xf32>
    %65 = vector.extract_strided_slice %14 {offsets = [0, 0, 0, 0], sizes = [1, 1, 1, 16], strides = [1, 1, 1, 1]} : vector<1x4x1x16xf32> to vector<1x1x1x16xf32>
    %66 = vector.extract_strided_slice %14 {offsets = [0, 0, 0, 0], sizes = [1, 1, 1, 16], strides = [1, 1, 1, 1]} : vector<1x4x1x16xf32> to vector<1x1x1x16xf32>
    %67 = arith.mulf %65, %66 : vector<1x1x1x16xf32>
    %68 = vector.extract_strided_slice %23 {offsets = [0, 0, 0, 0], sizes = [1, 1, 1, 16], strides = [1, 1, 1, 1]} : vector<1x4x1x16xf32> to vector<1x1x1x16xf32>
    %69 = vector.extract_strided_slice %23 {offsets = [0, 0, 0, 0], sizes = [1, 1, 1, 16], strides = [1, 1, 1, 1]} : vector<1x4x1x16xf32> to vector<1x1x1x16xf32>
    %70 = arith.mulf %68, %69 : vector<1x1x1x16xf32>
    %71 = arith.addf %67, %70 : vector<1x1x1x16xf32>
    %72 = vector.extract_strided_slice %14 {offsets = [0, 1, 0, 0], sizes = [1, 1, 1, 16], strides = [1, 1, 1, 1]} : vector<1x4x1x16xf32> to vector<1x1x1x16xf32>
    %73 = vector.extract_strided_slice %14 {offsets = [0, 1, 0, 0], sizes = [1, 1, 1, 16], strides = [1, 1, 1, 1]} : vector<1x4x1x16xf32> to vector<1x1x1x16xf32>
    %74 = arith.mulf %72, %73 : vector<1x1x1x16xf32>
    %75 = vector.extract_strided_slice %23 {offsets = [0, 1, 0, 0], sizes = [1, 1, 1, 16], strides = [1, 1, 1, 1]} : vector<1x4x1x16xf32> to vector<1x1x1x16xf32>
    %76 = vector.extract_strided_slice %23 {offsets = [0, 1, 0, 0], sizes = [1, 1, 1, 16], strides = [1, 1, 1, 1]} : vector<1x4x1x16xf32> to vector<1x1x1x16xf32>
    %77 = arith.mulf %75, %76 : vector<1x1x1x16xf32>
    %78 = arith.addf %74, %77 : vector<1x1x1x16xf32>
    %79 = arith.addf %71, %78 : vector<1x1x1x16xf32>
    %80 = vector.extract_strided_slice %14 {offsets = [0, 2, 0, 0], sizes = [1, 1, 1, 16], strides = [1, 1, 1, 1]} : vector<1x4x1x16xf32> to vector<1x1x1x16xf32>
    %81 = vector.extract_strided_slice %14 {offsets = [0, 2, 0, 0], sizes = [1, 1, 1, 16], strides = [1, 1, 1, 1]} : vector<1x4x1x16xf32> to vector<1x1x1x16xf32>
    %82 = arith.mulf %80, %81 : vector<1x1x1x16xf32>
    %83 = vector.extract_strided_slice %23 {offsets = [0, 2, 0, 0], sizes = [1, 1, 1, 16], strides = [1, 1, 1, 1]} : vector<1x4x1x16xf32> to vector<1x1x1x16xf32>
    %84 = vector.extract_strided_slice %23 {offsets = [0, 2, 0, 0], sizes = [1, 1, 1, 16], strides = [1, 1, 1, 1]} : vector<1x4x1x16xf32> to vector<1x1x1x16xf32>
    %85 = arith.mulf %83, %84 : vector<1x1x1x16xf32>
    %86 = arith.addf %82, %85 : vector<1x1x1x16xf32>
    %87 = arith.addf %79, %86 : vector<1x1x1x16xf32>
    %88 = vector.extract_strided_slice %14 {offsets = [0, 3, 0, 0], sizes = [1, 1, 1, 16], strides = [1, 1, 1, 1]} : vector<1x4x1x16xf32> to vector<1x1x1x16xf32>
    %89 = vector.extract_strided_slice %14 {offsets = [0, 3, 0, 0], sizes = [1, 1, 1, 16], strides = [1, 1, 1, 1]} : vector<1x4x1x16xf32> to vector<1x1x1x16xf32>
    %90 = arith.mulf %88, %89 : vector<1x1x1x16xf32>
    %91 = vector.extract_strided_slice %23 {offsets = [0, 3, 0, 0], sizes = [1, 1, 1, 16], strides = [1, 1, 1, 1]} : vector<1x4x1x16xf32> to vector<1x1x1x16xf32>
    %92 = vector.extract_strided_slice %23 {offsets = [0, 3, 0, 0], sizes = [1, 1, 1, 16], strides = [1, 1, 1, 1]} : vector<1x4x1x16xf32> to vector<1x1x1x16xf32>
    %93 = arith.mulf %91, %92 : vector<1x1x1x16xf32>
    %94 = arith.addf %90, %93 : vector<1x1x1x16xf32>
    %95 = arith.addf %87, %94 : vector<1x1x1x16xf32>
    %96 = vector.broadcast %0 : f32 to vector<1x1x1x16xf32>
    %97 = arith.cmpf olt, %95, %96 : vector<1x1x1x16xf32>
    %cst_15 = arith.constant 0.000000e+00 : f32
    %98 = vector.shape_cast %97 : vector<1x1x1x16xi1> to vector<1x1x1x16xi1>
    %99 = vector.broadcast %98 : vector<1x1x1x16xi1> to vector<1x4x1x16xi1>
    %100 = vector.broadcast %cst_15 : f32 to vector<1x4x1x16xf32>
    %101 = arith.select %99, %100, %23 : vector<1x4x1x16xi1>, vector<1x4x1x16xf32>
    %c1_i32 = arith.constant 1 : i32
    %102 = tpu.dynamic_rotate %64 by %c1_i32 dim 2 : vector<1x4x8x16xf32>, i32 -> vector<1x4x8x16xf32>
    %103 = vector.shape_cast %8 : vector<1x1x8x16xi1> to vector<1x1x8x16xi1>
    %104 = vector.broadcast %103 : vector<1x1x8x16xi1> to vector<1x4x8x16xi1>
    %105 = vector.shape_cast %101 : vector<1x4x1x16xf32> to vector<1x4x1x16xf32>
    %106 = vector.broadcast %105 : vector<1x4x1x16xf32> to vector<1x4x8x16xf32>
    %107 = arith.select %104, %106, %102 : vector<1x4x8x16xi1>, vector<1x4x8x16xf32>
    %c1_i32_16 = arith.constant 1 : i32
    %108 = tpu.dynamic_rotate %60 by %c1_i32_16 dim 3 : vector<1x4x8x16xf32>, i32 -> vector<1x4x8x16xf32>
    %109 = arith.subf %108, %60 : vector<1x4x8x16xf32>
    %110 = arith.subf %107, %64 : vector<1x4x8x16xf32>
    %111 = arith.addf %109, %110 : vector<1x4x8x16xf32>
    %c0_17 = arith.constant 0 : index
    %c0_18 = arith.constant 0 : index
    %c0_19 = arith.constant 0 : index
    %c0_20 = arith.constant 0 : index
    %112 = vector.load %arg6[%c0_17, %c0_18, %c0_19, %c0_20] : memref<1x4x8x16xf32, #tpu.memory_space<vmem>>, vector<1x4x8x16xf32>
    tpu.vector_store %arg6[%c0_17, %c0_18, %c0_19, %c0_20], %111 {strides = array<i32>} : memref<1x4x8x16xf32, #tpu.memory_space<vmem>>, vector<1x4x8x16xf32>,
    return
  }
  func.func @transform_0(%arg0: i32, %arg1: i32) -> i32 {
    %c0_i32 = arith.constant 0 : i32
    %c0_i32_0 = arith.constant 0 : i32
    return %c0_i32 : i32
  }
  func.func @transform_1(%arg0: i32, %arg1: i32) -> (i32, i32, i32, i32) {
    %c0_i32 = arith.constant 0 : i32
    %c0_i32_0 = arith.constant 0 : i32
    %c0_i32_1 = arith.constant 0 : i32
    return %arg0, %c0_i32, %arg1, %c0_i32_0 : i32, i32, i32, i32
  }
  func.func @transform_2(%arg0: i32, %arg1: i32) -> (i32, i32, i32, i32) {
    %c1_i32 = arith.constant 1 : i32
    %0 = arith.muli %arg1, %c1_i32 : i32
    %c1_i32_0 = arith.constant 1 : i32
    %1 = arith.addi %0, %c1_i32_0 : i32
    %c2_i32 = arith.constant 2 : i32
    %c0_i32 = arith.constant 0 : i32
    %2 = arith.cmpi eq, %c2_i32, %c0_i32 : i32
    %c1_i32_1 = arith.constant 1 : i32
    %3 = arith.select %2, %c1_i32_1, %c2_i32 : i32
    %4 = arith.remsi %1, %3 : i32
    %c0_i32_2 = arith.constant 0 : i32
    %5 = arith.cmpi ne, %4, %c0_i32_2 : i32
    %c0_i32_3 = arith.constant 0 : i32
    %6 = arith.cmpi slt, %4, %c0_i32_3 : i32
    %c0_i32_4 = arith.constant 0 : i32
    %7 = arith.cmpi slt, %3, %c0_i32_4 : i32
    %8 = arith.xori %6, %7 : i1
    %9 = arith.andi %8, %5 : i1
    %10 = arith.addi %4, %3 : i32
    %11 = arith.select %9, %10, %4 : i32
    %c0_i32_5 = arith.constant 0 : i32
    %c0_i32_6 = arith.constant 0 : i32
    %c0_i32_7 = arith.constant 0 : i32
    return %arg0, %c0_i32_5, %11, %c0_i32_6 : i32, i32, i32, i32
  }
  func.func @transform_3(%arg0: i32, %arg1: i32) -> (i32, i32, i32, i32) {
    %c1_i32 = arith.constant 1 : i32
    %0 = arith.addi %arg1, %c1_i32 : i32
    %c1_i32_0 = arith.constant 1 : i32
    %1 = arith.muli %0, %c1_i32_0 : i32
    %c2_i32 = arith.constant 2 : i32
    %c0_i32 = arith.constant 0 : i32
    %2 = arith.cmpi eq, %c2_i32, %c0_i32 : i32
    %c1_i32_1 = arith.constant 1 : i32
    %3 = arith.select %2, %c1_i32_1, %c2_i32 : i32
    %4 = arith.remsi %1, %3 : i32
    %c0_i32_2 = arith.constant 0 : i32
    %5 = arith.cmpi ne, %4, %c0_i32_2 : i32
    %c0_i32_3 = arith.constant 0 : i32
    %6 = arith.cmpi slt, %4, %c0_i32_3 : i32
    %c0_i32_4 = arith.constant 0 : i32
    %7 = arith.cmpi slt, %3, %c0_i32_4 : i32
    %8 = arith.xori %6, %7 : i1
    %9 = arith.andi %8, %5 : i1
    %10 = arith.addi %4, %3 : i32
    %11 = arith.select %9, %10, %4 : i32
    %c0_i32_5 = arith.constant 0 : i32
    %c0_i32_6 = arith.constant 0 : i32
    %c0_i32_7 = arith.constant 0 : i32
    return %arg0, %c0_i32_5, %11, %c0_i32_6 : i32, i32, i32, i32
  }
  func.func @transform_4(%arg0: i32, %arg1: i32) -> (i32, i32, i32, i32) {
    %c0_i32 = arith.constant 0 : i32
    %c0_i32_0 = arith.constant 0 : i32
    %c0_i32_1 = arith.constant 0 : i32
    return %arg0, %c0_i32, %arg1, %c0_i32_0 : i32, i32, i32, i32
  }
}

</mosaic_0001>

<llo_original>
// kernel: closed_call.8
$region0: #{closed_call.8}
  #allocation0 [shape = 'u32[]', space=smem, size = 0x4, offset = 0x4, fixed_abs, tag = 'smem constant byte address 0x4 - core index']
  #allocation1 [shape = 'u32[144,128]{1,0:T(1,128)}', space=vmem, size = 0x12000, scoped, tag = 'internal scratch']
  #allocation2 [shape = 'f32[1]{0:T(128)S(6)}', space=smem, size = 0x200, scoped, tag = 'scoped memory for closed_call.8']
  %s0 = inlined_call_operand.<no memory space> [shape: f32[1], index: 0, kind: input, shape index: {}]
  %s1 = inlined_call_operand.vmem [shape: f32[2,4,16,16], index: 1, kind: input, shape index: {}, may-alias: {1,2,3}]
  %s2 = inlined_call_operand.vmem [shape: f32[2,4,16,16], index: 2, kind: input, shape index: {}, may-alias: {1,2,3}]
  %s3 = inlined_call_operand.vmem [shape: f32[2,4,16,16], index: 3, kind: input, shape index: {}, may-alias: {1,2,3}]
  %s4 = inlined_call_operand.vmem [shape: f32[2,4,16,16], index: 4, kind: output, shape index: {}]
  %s5 = sld [smem:[#allocation0]]
  $region197: #{closed_call.8} parent=0
    _
  %s7 = ssub.s32 1, %s5
  %s8 = scalar_select 0, %s7, %s5
  %9 = sst [smem:[#allocation2]] %s0
  $region1: #{closed_call.8} parent=0
    #allocation3 [shape = 'u8[32768]{0}', space=vmem, size = 0x8000, scoped, tag = 'input window, operand 1']
    #allocation4 [shape = 'u8[32768]{0}', space=vmem, size = 0x8000, scoped, tag = 'input window, operand 2']
    #allocation5 [shape = 'u8[32768]{0}', space=vmem, size = 0x8000, scoped, tag = 'input window, operand 3']
    #allocation6 [shape = 'u8[32768]{0}', space=vmem, size = 0x8000, scoped, tag = 'output window, operand 0']
    loop: start=0, step=1, limit=6
    $region2: #{closed_call.8} parent=1 // loop_pre_header
      _
    $region3: #{closed_call.8} parent=1 // loop_header
      %s11 = sphi 0, %s15
      %p12 = scmp.ge.s32.totalorder %s11, 6
      %s18 = sphi 0, %s30
      %s19 = sphi 0, %s26
      %s20 = sphi 0, %s18
      %s21 = sphi 0, %s19
      %s22 = sphi 0, %s20
      %s23 = sphi 0, %s21
      %s31 = sphi 0, %s31
      %s33 = sphi 0, %s31
      %s34 = sphi 0, %s33
      %s48 = sphi 0, %s34
      %s56 = sphi 0, %s58
      %s59 = sphi 0, %s56
      %s60 = sphi 0, %s59
      %s76 = sphi 0, %s60
      %s110 = sphi 0, %s112
      %s113 = sphi 0, %s110
      %s114 = sphi 0, %s113
      %s130 = sphi 0, %s114
      %s164 = sphi 0, %s166
      %s167 = sphi 0, %s164
      %s168 = sphi 0, %s167
      %s184 = sphi 0, %s168
      %s192 = sphi 0, %s194
      %s195 = sphi 0, %s192
      %s196 = sphi 0, %s195
      %s212 = sphi 0, %s196
    $region4: #{closed_call.8} parent=1 // loop_header_branch
      %14 = sbr.rel (%p12) target = $region8
    $region5: #{closed_call.8} parent=1 // loop_body
      %s16 = ssub.s32 %s11, 1
      %s17 = ssub.s32 %s11, 2
      %s24 = sadd.s32 1, %s19
      %p25 = scmp.ge.s32.totalorder %s24, 2
      %s26 = scalar_select %p25, 0, %s24
      %s27 = sadd.s32 1, %s18
      %s28 = scalar_select %p25, %s27, %s18
      %p29 = scmp.ge.s32.totalorder %s28, 2
      %s30 = scalar_select %p29, 0, %s28
      %s32 = sadd.s32 %s31, 1
      %p35 = scmp.eq.s32.totalorder %s11, 3
      %p36 = scmp.ne.s32.totalorder %s31, %s33
      %p37 = scmp.eq.s32.totalorder %s11, 0
      %p38 = por %p36, %p37
      %p39 = scmp.ne.s32.totalorder %s31, %s33
      %p40 = scmp.eq.s32.totalorder %s16, 3
      %p41 = por %p39, %p40
      %p42 = scmp.ne.s32.totalorder %s33, %s34
      %p43 = scmp.eq.s32.totalorder %s16, 0
      %p44 = por %p42, %p43
      %p45 = scmp.ne.s32.totalorder %s33, %s34
      %p46 = scmp.eq.s32.totalorder %s17, 3
      %p47 = por %p45, %p46
      %p49 = scmp.ne.s32.totalorder %s34, %s48
      %p50 = scmp.eq.s32.totalorder %s17, 0
      %p51 = por %p49, %p50
      %s52 = ssub.s32 %s18, %s30
      %s53 = ssub.s32 %s19, %s26
      %s54 = sor.u32 %s52, %s53
      %p55 = scmp.eq.s32.totalorder %s54, 0
      %s57 = sadd.s32 %s56, 1
      %s58 = scalar_select %p55, %s56, %s57
      %p61 = pneg %p55
      %p62 = scmp.eq.s32.totalorder %s11, 3
      %p63 = por %p61, %p62
      %p64 = scmp.ne.s32.totalorder %s56, %s59
      %p65 = scmp.eq.s32.totalorder %s11, 0
      %p66 = por %p64, %p65
      %p67 = scmp.ne.s32.totalorder %s56, %s59
      %p68 = scmp.eq.s32.totalorder %s16, 3
      %p69 = por %p67, %p68
      %p70 = scmp.ne.s32.totalorder %s59, %s60
      %p71 = scmp.eq.s32.totalorder %s16, 0
      %p72 = por %p70, %p71
      %p73 = scmp.ne.s32.totalorder %s59, %s60
      %p74 = scmp.eq.s32.totalorder %s17, 3
      %p75 = por %p73, %p74
      %p77 = scmp.ne.s32.totalorder %s60, %s76
      %p78 = scmp.eq.s32.totalorder %s17, 0
      %p79 = por %p77, %p78
      %s80 = sadd.s32 %s19, 1
      %p81 = scmp.lt.s32.totalorder %s80, 0
      %s82 = ssub.s32 0, %s80
      %s83 = scalar_select %p81, %s82, %s80
      %s84 = sand.u32 %s83, 1
      %s85 = ssub.s32 0, %s84
      %s86 = scalar_select %p81, %s85, %s84
      %p87 = scmp.ne.s32.totalorder %s86, 0
      %p88 = scmp.lt.s32.totalorder %s86, 0
      %p89 = pnand %p88, %p87
      %p90 = pneg %p89
      %s91 = sadd.s32 %s86, 2
      %s92 = scalar_select %p90, %s91, %s86
      %s93 = sadd.s32 %s26, 1
      %p94 = scmp.lt.s32.totalorder %s93, 0
      %s95 = ssub.s32 0, %s93
      %s96 = scalar_select %p94, %s95, %s93
      %s97 = sand.u32 %s96, 1
      %s98 = ssub.s32 0, %s97
      %s99 = scalar_select %p94, %s98, %s97
      %p100 = scmp.ne.s32.totalorder %s99, 0
      %p101 = scmp.lt.s32.totalorder %s99, 0
      %p102 = pnand %p101, %p100
      %p103 = pneg %p102
      %s104 = sadd.s32 %s99, 2
      %s105 = scalar_select %p103, %s104, %s99
      %s106 = ssub.s32 %s18, %s30
      %s107 = ssub.s32 %s92, %s105
      %s108 = sor.u32 %s106, %s107
      %p109 = scmp.eq.s32.totalorder %s108, 0
      %s111 = sadd.s32 %s110, 1
      %s112 = scalar_select %p109, %s110, %s111
      %p115 = pneg %p109
      %p116 = scmp.eq.s32.totalorder %s11, 3
      %p117 = por %p115, %p116
      %p118 = scmp.ne.s32.totalorder %s110, %s113
      %p119 = scmp.eq.s32.totalorder %s11, 0
      %p120 = por %p118, %p119
      %p121 = scmp.ne.s32.totalorder %s110, %s113
      %p122 = scmp.eq.s32.totalorder %s16, 3
      %p123 = por %p121, %p122
      %p124 = scmp.ne.s32.totalorder %s113, %s114
      %p125 = scmp.eq.s32.totalorder %s16, 0
      %p126 = por %p124, %p125
      %p127 = scmp.ne.s32.totalorder %s113, %s114
      %p128 = scmp.eq.s32.totalorder %s17, 3
      %p129 = por %p127, %p128
      %p131 = scmp.ne.s32.totalorder %s114, %s130
      %p132 = scmp.eq.s32.totalorder %s17, 0
      %p133 = por %p131, %p132
      %s134 = sadd.s32 %s19, 1
      %p135 = scmp.lt.s32.totalorder %s134, 0
      %s136 = ssub.s32 0, %s134
      %s137 = scalar_select %p135, %s136, %s134
      %s138 = sand.u32 %s137, 1
      %s139 = ssub.s32 0, %s138
      %s140 = scalar_select %p135, %s139, %s138
      %p141 = scmp.ne.s32.totalorder %s140, 0
      %p142 = scmp.lt.s32.totalorder %s140, 0
      %p143 = pnand %p142, %p141
      %p144 = pneg %p143
      %s145 = sadd.s32 %s140, 2
      %s146 = scalar_select %p144, %s145, %s140
      %s147 = sadd.s32 %s26, 1
      %p148 = scmp.lt.s32.totalorder %s147, 0
      %s149 = ssub.s32 0, %s147
      %s150 = scalar_select %p148, %s149, %s147
      %s151 = sand.u32 %s150, 1
      %s152 = ssub.s32 0, %s151
      %s153 = scalar_select %p148, %s152, %s151
      %p154 = scmp.ne.s32.totalorder %s153, 0
      %p155 = scmp.lt.s32.totalorder %s153, 0
      %p156 = pnand %p155, %p154
      %p157 = pneg %p156
      %s158 = sadd.s32 %s153, 2
      %s159 = scalar_select %p157, %s158, %s153
      %s160 = ssub.s32 %s18, %s30
      %s161 = ssub.s32 %s146, %s159
      %s162 = sor.u32 %s160, %s161
      %p163 = scmp.eq.s32.totalorder %s162, 0
      %s165 = sadd.s32 %s164, 1
      %s166 = scalar_select %p163, %s164, %s165
      %p169 = pneg %p163
      %p170 = scmp.eq.s32.totalorder %s11, 3
      %p171 = por %p169, %p170
      %p172 = scmp.ne.s32.totalorder %s164, %s167
      %p173 = scmp.eq.s32.totalorder %s11, 0
      %p174 = por %p172, %p173
      %p175 = scmp.ne.s32.totalorder %s164, %s167
      %p176 = scmp.eq.s32.totalorder %s16, 3
      %p177 = por %p175, %p176
      %p178 = scmp.ne.s32.totalorder %s167, %s168
      %p179 = scmp.eq.s32.totalorder %s16, 0
      %p180 = por %p178, %p179
      %p181 = scmp.ne.s32.totalorder %s167, %s168
      %p182 = scmp.eq.s32.totalorder %s17, 3
      %p183 = por %p181, %p182
      %p185 = scmp.ne.s32.totalorder %s168, %s184
      %p186 = scmp.eq.s32.totalorder %s17, 0
      %p187 = por %p185, %p186
      %s188 = ssub.s32 %s18, %s30
      %s189 = ssub.s32 %s19, %s26
      %s190 = sor.u32 %s188, %s189
      %p191 = scmp.eq.s32.totalorder %s190, 0
      %s193 = sadd.s32 %s192, 1
      %s194 = scalar_select %p191, %s192, %s193
      %p197 = pneg %p191
      %p198 = scmp.eq.s32.totalorder %s11, 3
      %p199 = por %p197, %p198
      %p200 = scmp.ne.s32.totalorder %s192, %s195
      %p201 = scmp.eq.s32.totalorder %s11, 0
      %p202 = por %p200, %p201
      %p203 = scmp.ne.s32.totalorder %s192, %s195
      %p204 = scmp.eq.s32.totalorder %s16, 3
      %p205 = por %p203, %p204
      %p206 = scmp.ne.s32.totalorder %s195, %s196
      %p207 = scmp.eq.s32.totalorder %s16, 0
      %p208 = por %p206, %p207
      %p209 = scmp.ne.s32.totalorder %s195, %s196
      %p210 = scmp.eq.s32.totalorder %s17, 3
      %p211 = por %p209, %p210
      %p213 = scmp.ne.s32.totalorder %s196, %s212
      %p214 = scmp.eq.s32.totalorder %s17, 0
      %p215 = por %p213, %p214
      %p216 = scmp.le.s32.totalorder 1, %s11
      %p217 = scmp.lt.s32.totalorder %s11, 5
      %p218 = pnand %p216, %p217
      %p219 = pneg %p218
      // Predicated region
      $region9: #{closed_call.8} parent=5 // pred_check
        _
      $region10: #{closed_call.8} parent=5 // pred_check_branch
        %221 = sbr.rel (%p218) target = $region12
      $region11: #{closed_call.8} parent=5 // pred_region
        %s222 = ssub.s32 %s11, 1
        // Predicated region
        $region13: #{closed_call.8} parent=11 // pred_check
          %p223 = pneg %p44
        $region14: #{closed_call.8} parent=11 // pred_check_branch
          %225 = sbr.rel (%p223) target = $region16
        $region15: #{closed_call.8} parent=11 // pred_region
          _
        $region16: #{closed_call.8} parent=11 // pred_fallthru
          _
      $region12: #{closed_call.8} parent=5 // pred_fallthru
        _
      %p226 = scmp.lt.s32.totalorder %s11, 4
      // Predicated region
      $region17: #{closed_call.8} parent=5 // pred_check
        %p227 = pneg %p226
      $region18: #{closed_call.8} parent=5 // pred_check_branch
        %229 = sbr.rel (%p227) target = $region20
      $region19: #{closed_call.8} parent=5 // pred_region
        // Predicated region
        $region21: #{closed_call.8} parent=19 // pred_check
          %p230 = pneg %p66
        $region22: #{closed_call.8} parent=19 // pred_check_branch
          %232 = sbr.rel (%p230) target = $region24
        $region23: #{closed_call.8} parent=19 // pred_region
          %s233 = sand.u32 %s56, 1
          %s234 = sand.u32 %s56, 1
          %s235 = smul.addr %s234, 32
          %s236 = scalar_lea.vmem [#allocation3], %s235
          %s237 = smul.addr %s18, 8
          %s238 = sadd.s32 %s19, %s237
          %s239 = smul.addr %s238, 8
          %s240 = scalar_lea.vmem %s1, %s239
          // Predicated region
          $region25: #{closed_call.8} parent=23 // pred_check
            _
          $region26: #{closed_call.8} parent=23 // pred_check_branch
            %242 = sbr.rel (0) target = $region28
          $region27: #{closed_call.8} parent=23 // pred_region
            // Predicated region
            $region29: #{closed_call.8} parent=27 // pred_check
              _
            $region30: #{closed_call.8} parent=27 // pred_check_branch
              %244 = sbr.rel (0) target = $region32
            $region31: #{closed_call.8} parent=27 // pred_region
              // Predicated region
              $region44: #{closed_call.8} parent=31 // pred_check
                _
              $region45: #{closed_call.8} parent=31 // pred_check_branch
                %265 = sbr.rel (0) target = $region47
              $region46: #{closed_call.8} parent=31 // pred_region
                loop: start=0, step=1, limit=1
                $region48: #{closed_call.8} parent=46 // loop_pre_header
                  _
                $region49: #{closed_call.8} parent=46 // loop_header
                  %s267 = sphi 0, %s271
                  %p268 = scmp.ge.s32.totalorder %s267, 1
                  %s272 = sphi %s240, %s240
                  %s273 = sphi %s236, %s236
                $region50: #{closed_call.8} parent=46 // loop_header_branch
                  %270 = sbr.rel (%p268) target = $region54
                $region51: #{closed_call.8} parent=46 // loop_body
                  %v274 = vld [vmem:[%s272] sm:$0xff]
                  %275 = vst [vmem:[%s273] sm:$0xff] %v274
                  %v276 = vld [vmem:[%s272 + $0x10] sm:$0xff]
                  %277 = vst [vmem:[%s273 + $0x8] sm:$0xff] %v276
                  %v278 = vld [vmem:[%s272 + $0x20] sm:$0xff]
                  %279 = vst [vmem:[%s273 + $0x10] sm:$0xff] %v278
                  %v280 = vld [vmem:[%s272 + $0x30] sm:$0xff]
                  %281 = vst [vmem:[%s273 + $0x18] sm:$0xff] %v280
                $region52: #{closed_call.8} parent=46 // loop_footer
                  %s271 = sadd.s32 1, %s267
                $region53: #{closed_call.8} parent=46 // loop_footer_branch
                  %266 = sbr.rel target = $region49
                $region54: #{closed_call.8} parent=46 // loop_exit
                  _
              $region47: #{closed_call.8} parent=31 // pred_fallthru
                _
              // Predicated region
              $region55: #{closed_call.8} parent=31 // pred_check
                _
              $region56: #{closed_call.8} parent=31 // pred_check_branch
                %283 = sbr.rel target = $region58
              $region57: #{closed_call.8} parent=31 // pred_region
                _
              $region58: #{closed_call.8} parent=31 // pred_fallthru
                _
            $region32: #{closed_call.8} parent=27 // pred_fallthru
              _
            // Predicated region
            $region33: #{closed_call.8} parent=27 // pred_check
              _
            $region34: #{closed_call.8} parent=27 // pred_check_branch
              %246 = sbr.rel target = $region36
            $region35: #{closed_call.8} parent=27 // pred_region
              loop: start=0, step=1, limit=1
              $region37: #{closed_call.8} parent=35 // loop_pre_header
                _
              $region38: #{closed_call.8} parent=35 // loop_header
                %s249 = sphi 0, %s253
                %p250 = scmp.ge.s32.totalorder %s249, 1
                %s254 = sphi %s240, %s240
                %s255 = sphi %s236, %s236
              $region39: #{closed_call.8} parent=35 // loop_header_branch
                %252 = sbr.rel (%p250) target = $region43
              $region40: #{closed_call.8} parent=35 // loop_body
                %v256 = vld [vmem:[%s254] sm:$0xff]
                %257 = vst [vmem:[%s255] sm:$0xff] %v256
                %v258 = vld [vmem:[%s254 + $0x10] sm:$0xff]
                %259 = vst [vmem:[%s255 + $0x8] sm:$0xff] %v258
                %v260 = vld [vmem:[%s254 + $0x20] sm:$0xff]
                %261 = vst [vmem:[%s255 + $0x10] sm:$0xff] %v260
                %v262 = vld [vmem:[%s254 + $0x30] sm:$0xff]
                %263 = vst [vmem:[%s255 + $0x18] sm:$0xff] %v262
              $region41: #{closed_call.8} parent=35 // loop_footer
                %s253 = sadd.s32 1, %s249
              $region42: #{closed_call.8} parent=35 // loop_footer_branch
                %248 = sbr.rel target = $region38
              $region43: #{closed_call.8} parent=35 // loop_exit
                _
            $region36: #{closed_call.8} parent=27 // pred_fallthru
              _
          $region28: #{closed_call.8} parent=23 // pred_fallthru
            _
          %284 = vnop
        $region24: #{closed_call.8} parent=19 // pred_fallthru
          _
        // Predicated region
        $region59: #{closed_call.8} parent=19 // pred_check
          %p285 = pneg %p120
        $region60: #{closed_call.8} parent=19 // pred_check_branch
          %287 = sbr.rel (%p285) target = $region62
        $region61: #{closed_call.8} parent=19 // pred_region
          %s288 = sand.u32 %s110, 1
          %s289 = sand.u32 %s110, 1
          %s290 = smul.addr %s289, 32
          %s291 = scalar_lea.vmem [#allocation4], %s290
          %s292 = sadd.s32 %s19, 1
          %p293 = scmp.lt.s32.totalorder %s292, 0
          %s294 = ssub.s32 0, %s292
          %s295 = scalar_select %p293, %s294, %s292
          %s296 = sand.u32 %s295, 1
          %s297 = ssub.s32 0, %s296
          %s298 = scalar_select %p293, %s297, %s296
          %p299 = scmp.ne.s32.totalorder %s298, 0
          %p300 = scmp.lt.s32.totalorder %s298, 0
          %p301 = pnand %p300, %p299
          %p302 = pneg %p301
          %s303 = sadd.s32 %s298, 2
          %s304 = scalar_select %p302, %s303, %s298
          %s305 = smul.addr %s18, 8
          %s306 = sadd.s32 %s304, %s305
          %s307 = smul.addr %s306, 8
          %s308 = scalar_lea.vmem %s2, %s307
          // Predicated region
          $region63: #{closed_call.8} parent=61 // pred_check
            _
          $region64: #{closed_call.8} parent=61 // pred_check_branch
            %310 = sbr.rel (0) target = $region66
          $region65: #{closed_call.8} parent=61 // pred_region
            // Predicated region
            $region67: #{closed_call.8} parent=65 // pred_check
              _
            $region68: #{closed_call.8} parent=65 // pred_check_branch
              %312 = sbr.rel (0) target = $region70
            $region69: #{closed_call.8} parent=65 // pred_region
              // Predicated region
              $region82: #{closed_call.8} parent=69 // pred_check
                _
              $region83: #{closed_call.8} parent=69 // pred_check_branch
                %333 = sbr.rel (0) target = $region85
              $region84: #{closed_call.8} parent=69 // pred_region
                loop: start=0, step=1, limit=1
                $region86: #{closed_call.8} parent=84 // loop_pre_header
                  _
                $region87: #{closed_call.8} parent=84 // loop_header
                  %s335 = sphi 0, %s339
                  %p336 = scmp.ge.s32.totalorder %s335, 1
                  %s340 = sphi %s308, %s308
                  %s341 = sphi %s291, %s291
                $region88: #{closed_call.8} parent=84 // loop_header_branch
                  %338 = sbr.rel (%p336) target = $region92
                $region89: #{closed_call.8} parent=84 // loop_body
                  %v342 = vld [vmem:[%s340] sm:$0xff]
                  %343 = vst [vmem:[%s341] sm:$0xff] %v342
                  %v344 = vld [vmem:[%s340 + $0x10] sm:$0xff]
                  %345 = vst [vmem:[%s341 + $0x8] sm:$0xff] %v344
                  %v346 = vld [vmem:[%s340 + $0x20] sm:$0xff]
                  %347 = vst [vmem:[%s341 + $0x10] sm:$0xff] %v346
                  %v348 = vld [vmem:[%s340 + $0x30] sm:$0xff]
                  %349 = vst [vmem:[%s341 + $0x18] sm:$0xff] %v348
                $region90: #{closed_call.8} parent=84 // loop_footer
                  %s339 = sadd.s32 1, %s335
                $region91: #{closed_call.8} parent=84 // loop_footer_branch
                  %334 = sbr.rel target = $region87
                $region92: #{closed_call.8} parent=84 // loop_exit
                  _
              $region85: #{closed_call.8} parent=69 // pred_fallthru
                _
              // Predicated region
              $region93: #{closed_call.8} parent=69 // pred_check
                _
              $region94: #{closed_call.8} parent=69 // pred_check_branch
                %351 = sbr.rel target = $region96
              $region95: #{closed_call.8} parent=69 // pred_region
                _
              $region96: #{closed_call.8} parent=69 // pred_fallthru
                _
            $region70: #{closed_call.8} parent=65 // pred_fallthru
              _
            // Predicated region
            $region71: #{closed_call.8} parent=65 // pred_check
              _
            $region72: #{closed_call.8} parent=65 // pred_check_branch
              %314 = sbr.rel target = $region74
            $region73: #{closed_call.8} parent=65 // pred_region
              loop: start=0, step=1, limit=1
              $region75: #{closed_call.8} parent=73 // loop_pre_header
                _
              $region76: #{closed_call.8} parent=73 // loop_header
                %s317 = sphi 0, %s321
                %p318 = scmp.ge.s32.totalorder %s317, 1
                %s322 = sphi %s308, %s308
                %s323 = sphi %s291, %s291
              $region77: #{closed_call.8} parent=73 // loop_header_branch
                %320 = sbr.rel (%p318) target = $region81
              $region78: #{closed_call.8} parent=73 // loop_body
                %v324 = vld [vmem:[%s322] sm:$0xff]
                %325 = vst [vmem:[%s323] sm:$0xff] %v324
                %v326 = vld [vmem:[%s322 + $0x10] sm:$0xff]
                %327 = vst [vmem:[%s323 + $0x8] sm:$0xff] %v326
                %v328 = vld [vmem:[%s322 + $0x20] sm:$0xff]
                %329 = vst [vmem:[%s323 + $0x10] sm:$0xff] %v328
                %v330 = vld [vmem:[%s322 + $0x30] sm:$0xff]
                %331 = vst [vmem:[%s323 + $0x18] sm:$0xff] %v330
              $region79: #{closed_call.8} parent=73 // loop_footer
                %s321 = sadd.s32 1, %s317
              $region80: #{closed_call.8} parent=73 // loop_footer_branch
                %316 = sbr.rel target = $region76
              $region81: #{closed_call.8} parent=73 // loop_exit
                _
            $region74: #{closed_call.8} parent=65 // pred_fallthru
              _
          $region66: #{closed_call.8} parent=61 // pred_fallthru
            _
          %352 = vnop
        $region62: #{closed_call.8} parent=19 // pred_fallthru
          _
        // Predicated region
        $region97: #{closed_call.8} parent=19 // pred_check
          %p353 = pneg %p174
        $region98: #{closed_call.8} parent=19 // pred_check_branch
          %355 = sbr.rel (%p353) target = $region100
        $region99: #{closed_call.8} parent=19 // pred_region
          %s356 = sand.u32 %s164, 1
          %s357 = sand.u32 %s164, 1
          %s358 = smul.addr %s357, 32
          %s359 = scalar_lea.vmem [#allocation5], %s358
          %s360 = sadd.s32 %s19, 1
          %p361 = scmp.lt.s32.totalorder %s360, 0
          %s362 = ssub.s32 0, %s360
          %s363 = scalar_select %p361, %s362, %s360
          %s364 = sand.u32 %s363, 1
          %s365 = ssub.s32 0, %s364
          %s366 = scalar_select %p361, %s365, %s364
          %p367 = scmp.ne.s32.totalorder %s366, 0
          %p368 = scmp.lt.s32.totalorder %s366, 0
          %p369 = pnand %p368, %p367
          %p370 = pneg %p369
          %s371 = sadd.s32 %s366, 2
          %s372 = scalar_select %p370, %s371, %s366
          %s373 = smul.addr %s18, 8
          %s374 = sadd.s32 %s372, %s373
          %s375 = smul.addr %s374, 8
          %s376 = scalar_lea.vmem %s3, %s375
          // Predicated region
          $region101: #{closed_call.8} parent=99 // pred_check
            _
          $region102: #{closed_call.8} parent=99 // pred_check_branch
            %378 = sbr.rel (0) target = $region104
          $region103: #{closed_call.8} parent=99 // pred_region
            // Predicated region
            $region105: #{closed_call.8} parent=103 // pred_check
              _
            $region106: #{closed_call.8} parent=103 // pred_check_branch
              %380 = sbr.rel (0) target = $region108
            $region107: #{closed_call.8} parent=103 // pred_region
              // Predicated region
              $region120: #{closed_call.8} parent=107 // pred_check
                _
              $region121: #{closed_call.8} parent=107 // pred_check_branch
                %401 = sbr.rel (0) target = $region123
              $region122: #{closed_call.8} parent=107 // pred_region
                loop: start=0, step=1, limit=1
                $region124: #{closed_call.8} parent=122 // loop_pre_header
                  _
                $region125: #{closed_call.8} parent=122 // loop_header
                  %s403 = sphi 0, %s407
                  %p404 = scmp.ge.s32.totalorder %s403, 1
                  %s408 = sphi %s376, %s376
                  %s409 = sphi %s359, %s359
                $region126: #{closed_call.8} parent=122 // loop_header_branch
                  %406 = sbr.rel (%p404) target = $region130
                $region127: #{closed_call.8} parent=122 // loop_body
                  %v410 = vld [vmem:[%s408] sm:$0xff]
                  %411 = vst [vmem:[%s409] sm:$0xff] %v410
                  %v412 = vld [vmem:[%s408 + $0x10] sm:$0xff]
                  %413 = vst [vmem:[%s409 + $0x8] sm:$0xff] %v412
                  %v414 = vld [vmem:[%s408 + $0x20] sm:$0xff]
                  %415 = vst [vmem:[%s409 + $0x10] sm:$0xff] %v414
                  %v416 = vld [vmem:[%s408 + $0x30] sm:$0xff]
                  %417 = vst [vmem:[%s409 + $0x18] sm:$0xff] %v416
                $region128: #{closed_call.8} parent=122 // loop_footer
                  %s407 = sadd.s32 1, %s403
                $region129: #{closed_call.8} parent=122 // loop_footer_branch
                  %402 = sbr.rel target = $region125
                $region130: #{closed_call.8} parent=122 // loop_exit
                  _
              $region123: #{closed_call.8} parent=107 // pred_fallthru
                _
              // Predicated region
              $region131: #{closed_call.8} parent=107 // pred_check
                _
              $region132: #{closed_call.8} parent=107 // pred_check_branch
                %419 = sbr.rel target = $region134
              $region133: #{closed_call.8} parent=107 // pred_region
                _
              $region134: #{closed_call.8} parent=107 // pred_fallthru
                _
            $region108: #{closed_call.8} parent=103 // pred_fallthru
              _
            // Predicated region
            $region109: #{closed_call.8} parent=103 // pred_check
              _
            $region110: #{closed_call.8} parent=103 // pred_check_branch
              %382 = sbr.rel target = $region112
            $region111: #{closed_call.8} parent=103 // pred_region
              loop: start=0, step=1, limit=1
              $region113: #{closed_call.8} parent=111 // loop_pre_header
                _
              $region114: #{closed_call.8} parent=111 // loop_header
                %s385 = sphi 0, %s389
                %p386 = scmp.ge.s32.totalorder %s385, 1
                %s390 = sphi %s376, %s376
                %s391 = sphi %s359, %s359
              $region115: #{closed_call.8} parent=111 // loop_header_branch
                %388 = sbr.rel (%p386) target = $region119
              $region116: #{closed_call.8} parent=111 // loop_body
                %v392 = vld [vmem:[%s390] sm:$0xff]
                %393 = vst [vmem:[%s391] sm:$0xff] %v392
                %v394 = vld [vmem:[%s390 + $0x10] sm:$0xff]
                %395 = vst [vmem:[%s391 + $0x8] sm:$0xff] %v394
                %v396 = vld [vmem:[%s390 + $0x20] sm:$0xff]
                %397 = vst [vmem:[%s391 + $0x10] sm:$0xff] %v396
                %v398 = vld [vmem:[%s390 + $0x30] sm:$0xff]
                %399 = vst [vmem:[%s391 + $0x18] sm:$0xff] %v398
              $region117: #{closed_call.8} parent=111 // loop_footer
                %s389 = sadd.s32 1, %s385
              $region118: #{closed_call.8} parent=111 // loop_footer_branch
                %384 = sbr.rel target = $region114
              $region119: #{closed_call.8} parent=111 // loop_exit
                _
            $region112: #{closed_call.8} parent=103 // pred_fallthru
              _
          $region104: #{closed_call.8} parent=99 // pred_fallthru
            _
          %420 = vnop
        $region100: #{closed_call.8} parent=19 // pred_fallthru
          _
      $region20: #{closed_call.8} parent=5 // pred_fallthru
        _
      %p421 = scmp.le.s32.totalorder 1, %s11
      %p422 = scmp.lt.s32.totalorder %s11, 5
      %p423 = pnand %p421, %p422
      %p424 = pneg %p423
      // Predicated region
      $region135: #{closed_call.8} parent=5 // pred_check
        _
      $region136: #{closed_call.8} parent=5 // pred_check_branch
        %426 = sbr.rel (%p423) target = $region138
      $region137: #{closed_call.8} parent=5 // pred_region
        %s427 = ssub.s32 %s11, 1
        %s428 = sand.u32 %s59, 1
        %s429 = sand.u32 %s59, 1
        %s430 = smul.addr %s429, 32
        %s431 = scalar_lea.vmem [#allocation3], %s430
        // Predicated region
        $region139: #{closed_call.8} parent=137 // pred_check
          %p432 = pneg %p72
        $region140: #{closed_call.8} parent=137 // pred_check_branch
          %434 = sbr.rel (%p432) target = $region142
        $region141: #{closed_call.8} parent=137 // pred_region
          _
        $region142: #{closed_call.8} parent=137 // pred_fallthru
          _
        %s435 = sand.u32 %s113, 1
        %s436 = sand.u32 %s113, 1
        %s437 = smul.addr %s436, 32
        %s438 = scalar_lea.vmem [#allocation4], %s437
        // Predicated region
        $region143: #{closed_call.8} parent=137 // pred_check
          %p439 = pneg %p126
        $region144: #{closed_call.8} parent=137 // pred_check_branch
          %441 = sbr.rel (%p439) target = $region146
        $region145: #{closed_call.8} parent=137 // pred_region
          _
        $region146: #{closed_call.8} parent=137 // pred_fallthru
          _
        %s442 = sand.u32 %s167, 1
        %s443 = sand.u32 %s167, 1
        %s444 = smul.addr %s443, 32
        %s445 = scalar_lea.vmem [#allocation5], %s444
        // Predicated region
        $region147: #{closed_call.8} parent=137 // pred_check
          %p446 = pneg %p180
        $region148: #{closed_call.8} parent=137 // pred_check_branch
          %448 = sbr.rel (%p446) target = $region150
        $region149: #{closed_call.8} parent=137 // pred_region
          _
        $region150: #{closed_call.8} parent=137 // pred_fallthru
          _
        %p449 = pneg %p44
        %p450 = pneg %p41
        %s451 = sand.u32 %s59, 1
        %s452 = sand.u32 %s59, 1
        %s453 = smul.addr %s452, 32
        %s454 = scalar_lea.vmem [#allocation3], %s453
        %p455 = pneg %p72
        %p456 = pneg %p69
        %s457 = sand.u32 %s113, 1
        %s458 = sand.u32 %s113, 1
        %s459 = smul.addr %s458, 32
        %s460 = scalar_lea.vmem [#allocation4], %s459
        %p461 = pneg %p126
        %p462 = pneg %p123
        %s463 = sand.u32 %s167, 1
        %s464 = sand.u32 %s167, 1
        %s465 = smul.addr %s464, 32
        %s466 = scalar_lea.vmem [#allocation5], %s465
        %p467 = pneg %p180
        %p468 = pneg %p177
        %p469 = pneg %p208
        %p470 = pneg %p205
        %s471 = sand.u32 %s195, 1
        %s472 = sand.u32 %s195, 1
        %s473 = smul.addr %s472, 32
        %s474 = scalar_lea.vmem [#allocation6], %s473
        %s475 = sadd.s32 %s21, 1
        %p476 = scmp.lt.s32.totalorder %s475, 0
        %s477 = ssub.s32 0, %s475
        %s478 = scalar_select %p476, %s477, %s475
        %s479 = sand.u32 %s478, 1
        %s480 = ssub.s32 0, %s479
        %s481 = scalar_select %p476, %s480, %s479
        %p482 = scmp.ne.s32.totalorder %s481, 0
        %p483 = scmp.lt.s32.totalorder %s481, 0
        %p484 = pnand %p483, %p482
        %p485 = pneg %p484
        %s486 = sadd.s32 %s481, 2
        %s487 = scalar_select %p485, %s486, %s481
        %s488 = sadd.s32 %s21, 1
        %p489 = scmp.lt.s32.totalorder %s488, 0
        %s490 = ssub.s32 0, %s488
        %s491 = scalar_select %p489, %s490, %s488
        %s492 = sand.u32 %s491, 1
        %s493 = ssub.s32 0, %s492
        %s494 = scalar_select %p489, %s493, %s492
        %p495 = scmp.ne.s32.totalorder %s494, 0
        %p496 = scmp.lt.s32.totalorder %s494, 0
        %p497 = pnand %p496, %p495
        %p498 = pneg %p497
        %s499 = sadd.s32 %s494, 2
        %s500 = scalar_select %p498, %s499, %s494
        %s501 = sld [smem:[#allocation2]]
        %v502 = vld [vmem:[%s431] sm:$0xff]
        %v503 = vld [vmem:[%s431 + $0x8] sm:$0xff]
        %v504 = vld [vmem:[%s431 + $0x10] sm:$0xff]
        %v505 = vld [vmem:[%s431 + $0x18] sm:$0xff]
        %v506 = vld [vmem:[%s438] sm:$0xff]
        %v507 = vld [vmem:[%s438 + $0x8] sm:$0xff]
        %v508 = vld [vmem:[%s438 + $0x10] sm:$0xff]
        %v509 = vld [vmem:[%s438 + $0x18] sm:$0xff]
        %v510 = vld [vmem:[%s445] sm:$0xff]
        %v511 = vld [vmem:[%s445 + $0x8] sm:$0xff]
        %v512 = vld [vmem:[%s445 + $0x10] sm:$0xff]
        %v513 = vld [vmem:[%s445 + $0x18] sm:$0xff]
        %v514 = vlaneseq
        %v515 = vshrl.u32 %v514, 7
        %vm516 = vcmp.eq.s32.totalorder %v515, 0
        %vm517 = vcmp.eq.s32.totalorder %v515, 7
        %vm518 = vcmask 1047680
        %519 = vrot.lane.b32.xlu0 %v502, 16
        %v520 = vpop.permute.xlu0 %519
        %v521 = vsel %vm518, %v520, %v502
        %522 = vrot.lane.b32.xlu0 %v503, 16
        %v523 = vpop.permute.xlu0 %522
        %v524 = vsel %vm518, %v523, %v503
        %525 = vrot.lane.b32.xlu0 %v504, 16
        %v526 = vpop.permute.xlu0 %525
        %v527 = vsel %vm518, %v526, %v504
        %528 = vrot.lane.b32.xlu0 %v505, 16
        %v529 = vpop.permute.xlu0 %528
        %v530 = vsel %vm518, %v529, %v505
        %531 = vrot.lane.b32.xlu0 %v521, 16
        %v532 = vpop.permute.xlu0 %531
        %533 = vrot.lane.b32.xlu0 %v524, 16
        %v534 = vpop.permute.xlu0 %533
        %535 = vrot.lane.b32.xlu0 %v527, 16
        %v536 = vpop.permute.xlu0 %535
        %537 = vrot.lane.b32.xlu0 %v530, 16
        %v538 = vpop.permute.xlu0 %537
        %v539 = vsel %vm518, %v532, %v502
        %v540 = vsel %vm518, %v534, %v503
        %v541 = vsel %vm518, %v536, %v504
        %v542 = vsel %vm518, %v538, %v505
        %547 = vrot.lane.b32.xlu0 %v502, 1
        %v548 = vpop.permute.xlu0 %547
        %549 = vrot.lane.b32.xlu0 %v503, 1
        %v550 = vpop.permute.xlu0 %549
        %551 = vrot.lane.b32.xlu0 %v504, 1
        %v552 = vpop.permute.xlu0 %551
        %553 = vrot.lane.b32.xlu0 %v505, 1
        %v554 = vpop.permute.xlu0 %553
        %v559 = vsub.f32 %v539, %v548
        %v560 = vsub.f32 %v540, %v550
        %v561 = vsub.f32 %v541, %v552
        %v562 = vsub.f32 %v542, %v554
        %v567 = vrot.slane %v506, 7
        %v568 = vrot.slane %v507, 7
        %v569 = vrot.slane %v508, 7
        %v570 = vrot.slane %v509, 7
        %575 = vrot.lane.b32.xlu0 %v567, 16
        %v576 = vpop.permute.xlu0 %575
        %v577 = vsel %vm518, %v576, %v567
        %578 = vrot.lane.b32.xlu0 %v568, 16
        %v579 = vpop.permute.xlu0 %578
        %v580 = vsel %vm518, %v579, %v568
        %581 = vrot.lane.b32.xlu0 %v569, 16
        %v582 = vpop.permute.xlu0 %581
        %v583 = vsel %vm518, %v582, %v569
        %584 = vrot.lane.b32.xlu0 %v570, 16
        %v585 = vpop.permute.xlu0 %584
        %v586 = vsel %vm518, %v585, %v570
        %587 = vrot.lane.b32.xlu0 %v577, 16
        %v588 = vpop.permute.xlu0 %587
        %589 = vrot.lane.b32.xlu0 %v580, 16
        %v590 = vpop.permute.xlu0 %589
        %591 = vrot.lane.b32.xlu0 %v583, 16
        %v592 = vpop.permute.xlu0 %591
        %593 = vrot.lane.b32.xlu0 %v586, 16
        %v594 = vpop.permute.xlu0 %593
        %v595 = vsel %vm518, %v588, %v567
        %v596 = vsel %vm518, %v590, %v568
        %v597 = vsel %vm518, %v592, %v569
        %v598 = vsel %vm518, %v594, %v570
        %599 = vrot.lane.b32.xlu0 %v567, 1
        %v600 = vpop.permute.xlu0 %599
        %601 = vrot.lane.b32.xlu0 %v568, 1
        %v602 = vpop.permute.xlu0 %601
        %603 = vrot.lane.b32.xlu0 %v569, 1
        %v604 = vpop.permute.xlu0 %603
        %605 = vrot.lane.b32.xlu0 %v570, 1
        %v606 = vpop.permute.xlu0 %605
        %v611 = vsub.f32 %v595, %v600
        %v612 = vsub.f32 %v596, %v602
        %v613 = vsub.f32 %v597, %v604
        %v614 = vsub.f32 %v598, %v606
        %v615 = vrot.slane %v502, 1
        %v616 = vrot.slane %v503, 1
        %v617 = vrot.slane %v504, 1
        %v618 = vrot.slane %v505, 1
        %v619 = vsel %vm517, 1, 0
        %vm620 = vcmp.eq.s32.totalorder %v619, 1
        %v621 = vlaneseq
        %v622 = vshrl.u32 %v621, 7
        %v623 = vsub.s32 0, %v622
        %v624 = vrot.slane %v510, %v623
        %v625 = vlaneseq
        %v626 = vshrl.u32 %v625, 7
        %v627 = vsub.s32 0, %v626
        %v628 = vrot.slane %v511, %v627
        %v629 = vlaneseq
        %v630 = vshrl.u32 %v629, 7
        %v631 = vsub.s32 0, %v630
        %v632 = vrot.slane %v512, %v631
        %v633 = vlaneseq
        %v634 = vshrl.u32 %v633, 7
        %v635 = vsub.s32 0, %v634
        %v636 = vrot.slane %v513, %v635
        %v637 = vsel %vm620, %v624, %v615
        %v638 = vsel %vm620, %v628, %v616
        %v639 = vsel %vm620, %v632, %v617
        %v640 = vsel %vm620, %v636, %v618
        %v641 = vsub.f32 %v637, %v502
        %v642 = vsub.f32 %v638, %v503
        %v643 = vsub.f32 %v639, %v504
        %v644 = vsub.f32 %v640, %v505
        %v645 = vsub.f32 %v502, %v567
        %v646 = vsub.f32 %v503, %v568
        %v647 = vsub.f32 %v504, %v569
        %v648 = vsub.f32 %v505, %v570
        %v649 = vmul.f32 %v559, %v559
        %v650 = vmul.f32 %v641, %v641
        %652 = vrot.lane.b32.xlu0 %v650, 1
        %v653 = vpop.permute.xlu0 %652
        %v655 = vadd.f32 %v649, %v653
        %v656 = vmul.f32 %v560, %v560
        %v657 = vmul.f32 %v642, %v642
        %659 = vrot.lane.b32.xlu0 %v657, 1
        %v660 = vpop.permute.xlu0 %659
        %v662 = vadd.f32 %v656, %v660
        %v663 = vadd.f32 %v655, %v662
        %v664 = vmul.f32 %v561, %v561
        %v665 = vmul.f32 %v643, %v643
        %667 = vrot.lane.b32.xlu0 %v665, 1
        %v668 = vpop.permute.xlu0 %667
        %v670 = vadd.f32 %v664, %v668
        %v671 = vadd.f32 %v663, %v670
        %v672 = vmul.f32 %v562, %v562
        %v673 = vmul.f32 %v644, %v644
        %675 = vrot.lane.b32.xlu0 %v673, 1
        %v676 = vpop.permute.xlu0 %675
        %v678 = vadd.f32 %v672, %v676
        %v679 = vadd.f32 %v671, %v678
        %v680 = vstv %s501
        %vm681 = vcmp.lt.f32.partialorder %v679, %v680
        %v682 = vsel %vm681, 1, 0
        %vm683 = vcmp.eq.s32.totalorder %v682, 1
        %v684 = vsel %vm683, 0.0, %v559
        %v685 = vsel %vm683, 0.0, %v560
        %v686 = vsel %vm683, 0.0, %v561
        %v687 = vsel %vm683, 0.0, %v562
        %692 = vrot.lane.b32.xlu0 %v641, 1
        %v693 = vpop.permute.xlu0 %692
        %694 = vrot.lane.b32.xlu0 %v642, 1
        %v695 = vpop.permute.xlu0 %694
        %696 = vrot.lane.b32.xlu0 %v643, 1
        %v697 = vpop.permute.xlu0 %696
        %698 = vrot.lane.b32.xlu0 %v644, 1
        %v699 = vpop.permute.xlu0 %698
        %v704 = vsel %vm683, 0.0, %v693
        %v705 = vsel %vm683, 0.0, %v695
        %v706 = vsel %vm683, 0.0, %v697
        %v707 = vsel %vm683, 0.0, %v699
        %v708 = vmul.f32 %v611, %v611
        %v709 = vmul.f32 %v645, %v645
        %711 = vrot.lane.b32.xlu0 %v709, 1
        %v712 = vpop.permute.xlu0 %711
        %v714 = vadd.f32 %v708, %v712
        %v715 = vmul.f32 %v612, %v612
        %v716 = vmul.f32 %v646, %v646
        %718 = vrot.lane.b32.xlu0 %v716, 1
        %v719 = vpop.permute.xlu0 %718
        %v721 = vadd.f32 %v715, %v719
        %v722 = vadd.f32 %v714, %v721
        %v723 = vmul.f32 %v613, %v613
        %v724 = vmul.f32 %v647, %v647
        %726 = vrot.lane.b32.xlu0 %v724, 1
        %v727 = vpop.permute.xlu0 %726
        %v729 = vadd.f32 %v723, %v727
        %v730 = vadd.f32 %v722, %v729
        %v731 = vmul.f32 %v614, %v614
        %v732 = vmul.f32 %v648, %v648
        %734 = vrot.lane.b32.xlu0 %v732, 1
        %v735 = vpop.permute.xlu0 %734
        %v737 = vadd.f32 %v731, %v735
        %v738 = vadd.f32 %v730, %v737
        %vm739 = vcmp.lt.f32.partialorder %v738, %v680
        %v740 = vsel %vm739, 1, 0
        %vm741 = vcmp.eq.s32.totalorder %v740, 1
        %746 = vrot.lane.b32.xlu0 %v645, 1
        %v747 = vpop.permute.xlu0 %746
        %748 = vrot.lane.b32.xlu0 %v646, 1
        %v749 = vpop.permute.xlu0 %748
        %750 = vrot.lane.b32.xlu0 %v647, 1
        %v751 = vpop.permute.xlu0 %750
        %752 = vrot.lane.b32.xlu0 %v648, 1
        %v753 = vpop.permute.xlu0 %752
        %v758 = vsel %vm741, 0.0, %v747
        %v759 = vsel %vm741, 0.0, %v749
        %v760 = vsel %vm741, 0.0, %v751
        %v761 = vsel %vm741, 0.0, %v753
        %766 = vrot.lane.b32.xlu0 %v704, 127
        %v767 = vpop.permute.xlu0 %766
        %768 = vrot.lane.b32.xlu0 %v705, 127
        %v769 = vpop.permute.xlu0 %768
        %770 = vrot.lane.b32.xlu0 %v706, 127
        %v771 = vpop.permute.xlu0 %770
        %772 = vrot.lane.b32.xlu0 %v707, 127
        %v773 = vpop.permute.xlu0 %772
        %v778 = vrot.slane %v767, 7
        %v779 = vrot.slane %v769, 7
        %v780 = vrot.slane %v771, 7
        %v781 = vrot.slane %v773, 7
        %v782 = vsel %vm516, 1, 0
        %vm783 = vcmp.eq.s32.totalorder %v782, 1
        %v784 = vlaneseq
        %v785 = vshrl.u32 %v784, 7
        %v786 = vsub.s32 0, %v785
        %v787 = vrot.slane %v758, %v786
        %v788 = vlaneseq
        %v789 = vshrl.u32 %v788, 7
        %v790 = vsub.s32 0, %v789
        %v791 = vrot.slane %v759, %v790
        %v792 = vlaneseq
        %v793 = vshrl.u32 %v792, 7
        %v794 = vsub.s32 0, %v793
        %v795 = vrot.slane %v760, %v794
        %v796 = vlaneseq
        %v797 = vshrl.u32 %v796, 7
        %v798 = vsub.s32 0, %v797
        %v799 = vrot.slane %v761, %v798
        %804 = vrot.lane.b32.xlu0 %v778, 1
        %v805 = vpop.permute.xlu0 %804
        %806 = vrot.lane.b32.xlu0 %v779, 1
        %v807 = vpop.permute.xlu0 %806
        %808 = vrot.lane.b32.xlu0 %v780, 1
        %v809 = vpop.permute.xlu0 %808
        %810 = vrot.lane.b32.xlu0 %v781, 1
        %v811 = vpop.permute.xlu0 %810
        %v816 = vsel %vm783, %v787, %v805
        %v817 = vsel %vm783, %v791, %v807
        %v818 = vsel %vm783, %v795, %v809
        %v819 = vsel %vm783, %v799, %v811
        %824 = vrot.lane.b32.xlu0 %v684, 127
        %v825 = vpop.permute.xlu0 %824
        %826 = vrot.lane.b32.xlu0 %v685, 127
        %v827 = vpop.permute.xlu0 %826
        %828 = vrot.lane.b32.xlu0 %v686, 127
        %v829 = vpop.permute.xlu0 %828
        %830 = vrot.lane.b32.xlu0 %v687, 127
        %v831 = vpop.permute.xlu0 %830
        %836 = vrot.lane.b32.xlu0 %v825, 16
        %v837 = vpop.permute.xlu0 %836
        %v838 = vsel %vm518, %v837, %v825
        %839 = vrot.lane.b32.xlu0 %v827, 16
        %v840 = vpop.permute.xlu0 %839
        %v841 = vsel %vm518, %v840, %v827
        %842 = vrot.lane.b32.xlu0 %v829, 16
        %v843 = vpop.permute.xlu0 %842
        %v844 = vsel %vm518, %v843, %v829
        %845 = vrot.lane.b32.xlu0 %v831, 16
        %v846 = vpop.permute.xlu0 %845
        %v847 = vsel %vm518, %v846, %v831
        %848 = vrot.lane.b32.xlu0 %v838, 16
        %v849 = vpop.permute.xlu0 %848
        %850 = vrot.lane.b32.xlu0 %v841, 16
        %v851 = vpop.permute.xlu0 %850
        %852 = vrot.lane.b32.xlu0 %v844, 16
        %v853 = vpop.permute.xlu0 %852
        %854 = vrot.lane.b32.xlu0 %v847, 16
        %v855 = vpop.permute.xlu0 %854
        %v856 = vsel %vm518, %v849, %v825
        %v857 = vsel %vm518, %v851, %v827
        %v858 = vsel %vm518, %v853, %v829
        %v859 = vsel %vm518, %v855, %v831
        %860 = vrot.lane.b32.xlu0 %v684, 14
        %v861 = vpop.permute.xlu0 %860
        %862 = vrot.lane.b32.xlu0 %v685, 14
        %v863 = vpop.permute.xlu0 %862
        %864 = vrot.lane.b32.xlu0 %v686, 14
        %v865 = vpop.permute.xlu0 %864
        %866 = vrot.lane.b32.xlu0 %v687, 14
        %v867 = vpop.permute.xlu0 %866
        %v872 = vsub.f32 %v856, %v861
        %v873 = vsub.f32 %v857, %v863
        %v874 = vsub.f32 %v858, %v865
        %v875 = vsub.f32 %v859, %v867
        %v876 = vsub.f32 %v816, %v704
        %v877 = vsub.f32 %v817, %v705
        %v878 = vsub.f32 %v818, %v706
        %v879 = vsub.f32 %v819, %v707
        %884 = vrot.lane.b32.xlu0 %v876, 14
        %v885 = vpop.permute.xlu0 %884
        %886 = vrot.lane.b32.xlu0 %v877, 14
        %v887 = vpop.permute.xlu0 %886
        %888 = vrot.lane.b32.xlu0 %v878, 14
        %v889 = vpop.permute.xlu0 %888
        %890 = vrot.lane.b32.xlu0 %v879, 14
        %v891 = vpop.permute.xlu0 %890
        %v896 = vadd.f32 %v872, %v885
        %v897 = vadd.f32 %v873, %v887
        %v898 = vadd.f32 %v874, %v889
        %v899 = vadd.f32 %v875, %v891
        %904 = vrot.lane.b32.xlu0 %v896, 113
        %v905 = vpop.permute.xlu0 %904
        %906 = vrot.lane.b32.xlu0 %v897, 113
        %v907 = vpop.permute.xlu0 %906
        %908 = vrot.lane.b32.xlu0 %v898, 113
        %v909 = vpop.permute.xlu0 %908
        %910 = vrot.lane.b32.xlu0 %v899, 113
        %v911 = vpop.permute.xlu0 %910
        %vm916 = vcmask 130048
        %917 = vst.msk [vmem:[%s474] sm:$0xff] %vm916, %v905
        %918 = vst.msk [vmem:[%s474 + $0x8] sm:$0xff] %vm916, %v907
        %919 = vst.msk [vmem:[%s474 + $0x10] sm:$0xff] %vm916, %v909
        %920 = vst.msk [vmem:[%s474 + $0x18] sm:$0xff] %vm916, %v911
        %s921 = sand.u32 %s195, 1
        %s922 = sand.u32 %s195, 1
        %s923 = smul.addr %s922, 32
        %s924 = scalar_lea.vmem [#allocation6], %s923
        // Predicated region
        $region151: #{closed_call.8} parent=137 // pred_check
          %p925 = pneg %p205
        $region152: #{closed_call.8} parent=137 // pred_check_branch
          %927 = sbr.rel (%p925) target = $region154
        $region153: #{closed_call.8} parent=137 // pred_region
          %s928 = smul.addr %s20, 8
          %s929 = sadd.s32 %s21, %s928
          %s930 = smul.addr %s929, 8
          %s931 = scalar_lea.vmem %s4, %s930
          // Predicated region
          $region155: #{closed_call.8} parent=153 // pred_check
            _
          $region156: #{closed_call.8} parent=153 // pred_check_branch
            %933 = sbr.rel (0) target = $region158
          $region157: #{closed_call.8} parent=153 // pred_region
            // Predicated region
            $region159: #{closed_call.8} parent=157 // pred_check
              _
            $region160: #{closed_call.8} parent=157 // pred_check_branch
              %935 = sbr.rel (0) target = $region162
            $region161: #{closed_call.8} parent=157 // pred_region
              // Predicated region
              $region174: #{closed_call.8} parent=161 // pred_check
                _
              $region175: #{closed_call.8} parent=161 // pred_check_branch
                %956 = sbr.rel (0) target = $region177
              $region176: #{closed_call.8} parent=161 // pred_region
                loop: start=0, step=1, limit=1
                $region178: #{closed_call.8} parent=176 // loop_pre_header
                  _
                $region179: #{closed_call.8} parent=176 // loop_header
                  %s958 = sphi 0, %s962
                  %p959 = scmp.ge.s32.totalorder %s958, 1
                  %s963 = sphi %s924, %s924
                  %s964 = sphi %s931, %s931
                $region180: #{closed_call.8} parent=176 // loop_header_branch
                  %961 = sbr.rel (%p959) target = $region184
                $region181: #{closed_call.8} parent=176 // loop_body
                  %v965 = vld [vmem:[%s963] sm:$0xff]
                  %966 = vst [vmem:[%s964] sm:$0xff] %v965
                  %v967 = vld [vmem:[%s963 + $0x8] sm:$0xff]
                  %968 = vst [vmem:[%s964 + $0x10] sm:$0xff] %v967
                  %v969 = vld [vmem:[%s963 + $0x10] sm:$0xff]
                  %970 = vst [vmem:[%s964 + $0x20] sm:$0xff] %v969
                  %v971 = vld [vmem:[%s963 + $0x18] sm:$0xff]
                  %972 = vst [vmem:[%s964 + $0x30] sm:$0xff] %v971
                $region182: #{closed_call.8} parent=176 // loop_footer
                  %s962 = sadd.s32 1, %s958
                $region183: #{closed_call.8} parent=176 // loop_footer_branch
                  %957 = sbr.rel target = $region179
                $region184: #{closed_call.8} parent=176 // loop_exit
                  _
              $region177: #{closed_call.8} parent=161 // pred_fallthru
                _
              // Predicated region
              $region185: #{closed_call.8} parent=161 // pred_check
                _
              $region186: #{closed_call.8} parent=161 // pred_check_branch
                %974 = sbr.rel target = $region188
              $region187: #{closed_call.8} parent=161 // pred_region
                _
              $region188: #{closed_call.8} parent=161 // pred_fallthru
                _
            $region162: #{closed_call.8} parent=157 // pred_fallthru
              _
            // Predicated region
            $region163: #{closed_call.8} parent=157 // pred_check
              _
            $region164: #{closed_call.8} parent=157 // pred_check_branch
              %937 = sbr.rel target = $region166
            $region165: #{closed_call.8} parent=157 // pred_region
              loop: start=0, step=1, limit=1
              $region167: #{closed_call.8} parent=165 // loop_pre_header
                _
              $region168: #{closed_call.8} parent=165 // loop_header
                %s940 = sphi 0, %s944
                %p941 = scmp.ge.s32.totalorder %s940, 1
                %s945 = sphi %s924, %s924
                %s946 = sphi %s931, %s931
              $region169: #{closed_call.8} parent=165 // loop_header_branch
                %943 = sbr.rel (%p941) target = $region173
              $region170: #{closed_call.8} parent=165 // loop_body
                %v947 = vld [vmem:[%s945] sm:$0xff]
                %948 = vst [vmem:[%s946] sm:$0xff] %v947
                %v949 = vld [vmem:[%s945 + $0x8] sm:$0xff]
                %950 = vst [vmem:[%s946 + $0x10] sm:$0xff] %v949
                %v951 = vld [vmem:[%s945 + $0x10] sm:$0xff]
                %952 = vst [vmem:[%s946 + $0x20] sm:$0xff] %v951
                %v953 = vld [vmem:[%s945 + $0x18] sm:$0xff]
                %954 = vst [vmem:[%s946 + $0x30] sm:$0xff] %v953
              $region171: #{closed_call.8} parent=165 // loop_footer
                %s944 = sadd.s32 1, %s940
              $region172: #{closed_call.8} parent=165 // loop_footer_branch
                %939 = sbr.rel target = $region168
              $region173: #{closed_call.8} parent=165 // loop_exit
                _
            $region166: #{closed_call.8} parent=157 // pred_fallthru
              _
          $region158: #{closed_call.8} parent=153 // pred_fallthru
            _
          %975 = vnop
        $region154: #{closed_call.8} parent=137 // pred_fallthru
          _
      $region138: #{closed_call.8} parent=5 // pred_fallthru
        _
      %p976 = scmp.le.s32.totalorder 2, %s11
      // Predicated region
      $region189: #{closed_call.8} parent=5 // pred_check
        %p977 = pneg %p976
      $region190: #{closed_call.8} parent=5 // pred_check_branch
        %979 = sbr.rel (%p977) target = $region192
      $region191: #{closed_call.8} parent=5 // pred_region
        %s980 = ssub.s32 %s11, 2
        // Predicated region
        $region193: #{closed_call.8} parent=191 // pred_check
          %p981 = pneg %p211
        $region194: #{closed_call.8} parent=191 // pred_check_branch
          %983 = sbr.rel (%p981) target = $region196
        $region195: #{closed_call.8} parent=191 // pred_region
          %s984 = sand.u32 %s196, 1
          %s985 = sand.u32 %s196, 1
          %s986 = smul.addr %s985, 32
          %s987 = scalar_lea.vmem [#allocation6], %s986
        $region196: #{closed_call.8} parent=191 // pred_fallthru
          _
      $region192: #{closed_call.8} parent=5 // pred_fallthru
        _
    $region6: #{closed_call.8} parent=1 // loop_footer
      %s15 = sadd.s32 1, %s11
    $region7: #{closed_call.8} parent=1 // loop_footer_branch
      %10 = sbr.rel target = $region3
    $region8: #{closed_call.8} parent=1 // loop_exit
      _

</llo_original>
